<compile_context>
chip_gen: v6e
topology: v6e:2x2x1
jax: 0.10.0
libtpu: 0.0.40
codegen_flags: <defaults>
</compile_context>

<pallas_src>
import functools
import math

import jax
import jax.numpy as jnp
import numpy as np
from jax.experimental import pallas as pl
from jax.experimental.pallas import tpu as pltpu


# ----------------------------------------------------------------------------
# Static coefficients (mirror Gaussiansmoothing.__init__, dim=2)
# ----------------------------------------------------------------------------
def _gaussian_1d_coeffs(kernel_size: int, sigma: float):
    """Normalized 1-D factor of the PyTorch module's 2-D gaussian buffer.

    The module's (K, K) kernel is the outer product of this vector with itself
    (including the module's quirky (x-mean)/(2*sigma) exponent and the final
    sum-normalization), so two 1-D passes reproduce the 2-D depthwise conv
    exactly. Returned as Python floats so they fold into VALU immediates.
    """
    mean = (kernel_size - 1) / 2.0
    g = [
        (1.0 / (sigma * math.sqrt(2.0 * math.pi)))
        * math.exp(-(((i - mean) / (2.0 * sigma)) ** 2))
        for i in range(kernel_size)
    ]
    s = sum(g)
    return [v / s for v in g]


def make_gaussian_weight(channels: int, kernel_size: int, sigma: float) -> jnp.ndarray:
    """Exact reproduction of the PyTorch buffer (channels, 1, K, K) with the
    group dim squeezed -> (channels, K, K). Used only by the reference conv."""
    ks = [kernel_size] * 2
    sig = [float(sigma)] * 2
    grids = jnp.meshgrid(
        *[jnp.arange(s, dtype=jnp.float32) for s in ks], indexing="ij"
    )
    kernel = jnp.ones((), dtype=jnp.float32)
    for size, std, mgrid in zip(ks, sig, grids):
        mean = (size - 1) / 2.0
        kernel = kernel * (
            1.0 / (std * math.sqrt(2.0 * math.pi))
            * jnp.exp(-(((mgrid - mean) / (2.0 * std)) ** 2))
        )
    kernel = kernel / jnp.sum(kernel)
    return jnp.broadcast_to(kernel[None, :, :], (channels, kernel_size, kernel_size))


# ----------------------------------------------------------------------------
# Pallas kernel: NCHW tile, separable symmetric 1-D passes, baked-in weights
# ----------------------------------------------------------------------------
def _smooth_kernel(x_ref, o_ref, *, w1d, K, Ho, Wo):
    # x_ref: (nc_blk, H, W) f32 tile in VMEM — W on lanes, H on sublanes.
    # o_ref: (nc_blk, Ho, Wo) — same natural NCHW layout, no wrapper transpose.
    x = x_ref[...].astype(jnp.float32)
    half = K // 2

    # Horizontal pass over W (lane axis), exploiting w[i] == w[K-1-i].
    h = None
    for i in range(half):
        j = K - 1 - i
        term = x[:, :, i:i + Wo] + x[:, :, j:j + Wo]
        h = w1d[i] * term if h is None else h + w1d[i] * term
    if K % 2 == 1:
        m = half
        t = w1d[m] * x[:, :, m:m + Wo]
        h = t if h is None else h + t

    # Vertical pass over H (sublane axis), same symmetry.
    v = None
    for i in range(half):
        j = K - 1 - i
        term = h[:, i:i + Ho, :] + h[:, j:j + Ho, :]
        v = w1d[i] * term if v is None else v + w1d[i] * term
    if K % 2 == 1:
        m = half
        t = w1d[m] * h[:, m:m + Ho, :]
        v = t if v is None else v + t

    o_ref[...] = v.astype(o_ref.dtype)


def _choose_nc_block(nc, plane_bytes, budget_bytes=1 << 20, min_steps=4):
    """Largest divisor of nc whose input tile (nc_blk * one (H,W) plane) fits
    the budget; prefer a block giving >= min_steps grid steps so both v7x
    TensorCores get >= 2 pipelined steps and double-buffering has work to hide."""
    divisors = [d for d in range(1, nc + 1) if nc % d == 0]
    fitting = [d for d in divisors if d * plane_bytes <= budget_bytes] or [1]
    best = max(fitting)
    preferred = [d for d in fitting if nc // d >= min_steps]
    if preferred:
        best = max(preferred)
    return best


def gaussian_smoothing(x: jnp.ndarray, kernel_size: int, sigma: float) -> jnp.ndarray:
    """x: (N, C, H, W). Returns (N, C, H-K+1, W-K+1), identical semantics to
    F.conv2d(x, gaussian_weight, groups=C) with no padding."""
    N, C, H, W = x.shape
    K = int(kernel_size)
    if K > H or K > W:
        raise ValueError(
            f"kernel_size {K} larger than spatial dims ({H}, {W}); "
            "valid conv output would be empty.")
    Ho, Wo = H - K + 1, W - K + 1
    w1d = _gaussian_1d_coeffs(K, float(sigma))

    NC = N * C
    # Free view: NCHW is already (N*C, H, W)-contiguous — no HBM transpose.
    xr = x.reshape(NC, H, W)

    plane_bytes = H * W * xr.dtype.itemsize
    nc_blk = _choose_nc_block(NC, plane_bytes)
    grid = (NC // nc_blk,)

    # TODO(synk): very large single planes (e.g. > ~2k x 2k f32) would need an
    # extra Ho-strip grid axis with K-1 halo rows (manual make_async_copy);
    # not needed for typical smoothing inputs since per-step granularity here
    # is a single (H, W) plane.
    # TODO(synk): on v7x (3.2 TB/s HBM) the taps may become VALU-bound; a bf16
    # tap path gated on chip generation could help there.

    kernel = functools.partial(_smooth_kernel, w1d=w1d, K=K, Ho=Ho, Wo=Wo)

    out = pl.pallas_call(
        kernel,
        out_shape=jax.ShapeDtypeStruct((NC, Ho, Wo), x.dtype),
        grid_spec=pltpu.PrefetchScalarGridSpec(
            num_scalar_prefetch=0,
            grid=grid,
            in_specs=[pl.BlockSpec((nc_blk, H, W), lambda i: (i, 0, 0))],
            out_specs=pl.BlockSpec((nc_blk, Ho, Wo), lambda i: (i, 0, 0)),
        ),
        compiler_params=pltpu.CompilerParams(
            dimension_semantics=("parallel",),
            vmem_limit_bytes=32 * 1024 * 1024,
        ),
    )(xr)

    return out.reshape(N, C, Ho, Wo)


# ----------------------------------------------------------------------------
# Reference (plain JAX) for correctness
# ----------------------------------------------------------------------------
def gaussian_smoothing_ref(x, weight):
    C = x.shape[1]
    w = weight[:, None, :, :]  # (C, 1, K, K) OIHW, depthwise
    return jax.lax.conv_general_dilated(
        x, w,
        window_strides=(1, 1),
        padding="VALID",
        dimension_numbers=("NCHW", "OIHW", "NCHW"),
        feature_group_count=C,
    )


if __name__ == "__main__":
    N, C, H, W = 2, 4, 16, 16
    kernel_size, sigma = 3, 1.0

    key = jax.random.PRNGKey(0)
    x = jax.random.normal(key, (N, C, H, W), dtype=jnp.float32)

    out = jax.block_until_ready(gaussian_smoothing(x, kernel_size, sigma))

    weight = make_gaussian_weight(C, kernel_size, sigma)
    ref = jax.block_until_ready(gaussian_smoothing_ref(x, weight))
    np.testing.assert_allclose(np.asarray(out), np.asarray(ref), rtol=1e-5, atol=1e-5)

    print("KERNEL_OK")
</pallas_src>

<mosaic_0001>
module attributes {stable_mosaic.version = 11 : i64} {
  func.func @_smooth_kernel(%arg0: i32, %arg1: memref<2x16x16xf32, #tpu.memory_space<vmem>>, %arg2: memref<2x14x14xf32, #tpu.memory_space<vmem>>) attributes {dimension_semantics = [#tpu.dimension_semantics<parallel>], iteration_bounds = array<i64: 4>, scalar_prefetch = 0 : i64, scratch_operands = 0 : i64, tpu.core_type = #tpu.core_type<tc>, window_params = [{transform_indices = @transform_0, window_bounds = array<i64: 2, 16, 16>}, {transform_indices = @transform_1, window_bounds = array<i64: 2, 14, 14>}]} {
    %c0 = arith.constant 0 : index
    %c0_0 = arith.constant 0 : index
    %c0_1 = arith.constant 0 : index
    %0 = vector.load %arg1[%c0, %c0_0, %c0_1] : memref<2x16x16xf32, #tpu.memory_space<vmem>>, vector<2x16x16xf32>
    %1 = vector.extract_strided_slice %0 {offsets = [0, 0, 0], sizes = [2, 16, 14], strides = [1, 1, 1]} : vector<2x16x16xf32> to vector<2x16x14xf32>
    %2 = vector.extract_strided_slice %0 {offsets = [0, 0, 2], sizes = [2, 16, 14], strides = [1, 1, 1]} : vector<2x16x16xf32> to vector<2x16x14xf32>
    %3 = arith.addf %1, %2 : vector<2x16x14xf32>
    %cst = arith.constant 0.304504335 : f32
    %4 = vector.broadcast %cst : f32 to vector<2x16x14xf32>
    %5 = arith.mulf %4, %3 : vector<2x16x14xf32>
    %6 = vector.extract_strided_slice %0 {offsets = [0, 0, 1], sizes = [2, 16, 14], strides = [1, 1, 1]} : vector<2x16x16xf32> to vector<2x16x14xf32>
    %cst_2 = arith.constant 0.3909913 : f32
    %7 = vector.broadcast %cst_2 : f32 to vector<2x16x14xf32>
    %8 = arith.mulf %7, %6 : vector<2x16x14xf32>
    %9 = arith.addf %5, %8 : vector<2x16x14xf32>
    %10 = vector.extract_strided_slice %9 {offsets = [0, 0, 0], sizes = [2, 14, 14], strides = [1, 1, 1]} : vector<2x16x14xf32> to vector<2x14x14xf32>
    %11 = vector.extract_strided_slice %9 {offsets = [0, 2, 0], sizes = [2, 14, 14], strides = [1, 1, 1]} : vector<2x16x14xf32> to vector<2x14x14xf32>
    %12 = arith.addf %10, %11 : vector<2x14x14xf32>
    %cst_3 = arith.constant 0.304504335 : f32
    %13 = vector.broadcast %cst_3 : f32 to vector<2x14x14xf32>
    %14 = arith.mulf %13, %12 : vector<2x14x14xf32>
    %15 = vector.extract_strided_slice %9 {offsets = [0, 1, 0], sizes = [2, 14, 14], strides = [1, 1, 1]} : vector<2x16x14xf32> to vector<2x14x14xf32>
    %cst_4 = arith.constant 0.3909913 : f32
    %16 = vector.broadcast %cst_4 : f32 to vector<2x14x14xf32>
    %17 = arith.mulf %16, %15 : vector<2x14x14xf32>
    %18 = arith.addf %14, %17 : vector<2x14x14xf32>
    %c0_5 = arith.constant 0 : index
    %c0_6 = arith.constant 0 : index
    %c0_7 = arith.constant 0 : index
    %19 = vector.load %arg2[%c0_5, %c0_6, %c0_7] : memref<2x14x14xf32, #tpu.memory_space<vmem>>, vector<2x14x14xf32>
    tpu.vector_store %arg2[%c0_5, %c0_6, %c0_7], %18 {strides = array<i32>} : memref<2x14x14xf32, #tpu.memory_space<vmem>>, vector<2x14x14xf32>,
    return
  }
  func.func @transform_0(%arg0: i32) -> (i32, i32, i32) {
    %c0_i32 = arith.constant 0 : i32
    %c0_i32_0 = arith.constant 0 : i32
    %c0_i32_1 = arith.constant 0 : i32
    return %arg0, %c0_i32, %c0_i32_0 : i32, i32, i32
  }
  func.func @transform_1(%arg0: i32) -> (i32, i32, i32) {
    %c0_i32 = arith.constant 0 : i32
    %c0_i32_0 = arith.constant 0 : i32
    %c0_i32_1 = arith.constant 0 : i32
    return %arg0, %c0_i32, %c0_i32_0 : i32, i32, i32
  }
}

</mosaic_0001>

<llo_original>
// kernel: tpu_custom_call.1
$region0: #{tpu_custom_call.1}
  #allocation0 [shape = 'u32[]', space=smem, size = 0x4, offset = 0x4, fixed_abs, tag = 'smem constant byte address 0x4 - core index']
  #allocation1 [shape = 'u32[144,128]{1,0:T(1,128)}', space=vmem, size = 0x12000, scoped, tag = 'internal scratch']
  %s0 = inlined_call_operand.hbm [shape: f32[8,16,16], index: 0, kind: input, shape index: {}]
  %s1 = inlined_call_operand.vmem [shape: f32[8,14,14], index: 1, kind: output, shape index: {}]
  %s2 = sld [smem:[#allocation0]]
  $region41: #{tpu_custom_call.1} parent=0
    _
  %s4 = ssub.s32 1, %s2
  %s5 = scalar_select 0, %s4, %s2
  $region1: #{tpu_custom_call.1} parent=0
    #allocation2 [shape = 'u8[32768]{0}', space=vmem, size = 0x8000, scoped, tag = 'input window, operand 0']
    #allocation3 [shape = 's32[2]{0}', space=sflag, size = 0x8, scoped, tag = 'scoped memory for tpu_custom_call.1']
    %6 = vsyncpa [#allocation3], 0
    %s7 = scalar_lea.sflag [#allocation3], 1
    %8 = vsyncpa %s7, 0
    loop: start=0, step=1, limit=6
    $region2: #{tpu_custom_call.1} parent=1 // loop_pre_header
      _
    $region3: #{tpu_custom_call.1} parent=1 // loop_header
      %s10 = sphi 0, %s14
      %p11 = scmp.ge.s32.totalorder %s10, 6
      %s20 = sphi 0, %s22
      %s23 = sphi 0, %s20
      %s24 = sphi 0, %s23
      %s40 = sphi 0, %s24
      %s46 = sphi 0, %s48
      %s49 = sphi 0, %s46
      %s50 = sphi 0, %s49
      %s66 = sphi 0, %s50
    $region4: #{tpu_custom_call.1} parent=1 // loop_header_branch
      %13 = sbr.rel (%p11) target = $region8
    $region5: #{tpu_custom_call.1} parent=1 // loop_body
      %s15 = ssub.s32 %s10, 1
      %s16 = ssub.s32 %s10, 2
      %s17 = sadd.s32 %s10, 1
      %s18 = ssub.s32 %s10, %s17
      %p19 = scmp.eq.s32.totalorder %s18, 0
      %s21 = sadd.s32 %s20, 1
      %s22 = scalar_select %p19, %s20, %s21
      %p25 = pneg %p19
      %p26 = scmp.eq.s32.totalorder %s10, 3
      %p27 = por %p25, %p26
      %p28 = scmp.ne.s32.totalorder %s20, %s23
      %p29 = scmp.eq.s32.totalorder %s10, 0
      %p30 = por %p28, %p29
      %p31 = scmp.ne.s32.totalorder %s20, %s23
      %p32 = scmp.eq.s32.totalorder %s15, 3
      %p33 = por %p31, %p32
      %p34 = scmp.ne.s32.totalorder %s23, %s24
      %p35 = scmp.eq.s32.totalorder %s15, 0
      %p36 = por %p34, %p35
      %p37 = scmp.ne.s32.totalorder %s23, %s24
      %p38 = scmp.eq.s32.totalorder %s16, 3
      %p39 = por %p37, %p38
      %p41 = scmp.ne.s32.totalorder %s24, %s40
      %p42 = scmp.eq.s32.totalorder %s16, 0
      %p43 = por %p41, %p42
      %s44 = ssub.s32 %s10, %s17
      %p45 = scmp.eq.s32.totalorder %s44, 0
      %s47 = sadd.s32 %s46, 1
      %s48 = scalar_select %p45, %s46, %s47
      %p51 = pneg %p45
      %p52 = scmp.eq.s32.totalorder %s10, 3
      %p53 = por %p51, %p52
      %p54 = scmp.ne.s32.totalorder %s46, %s49
      %p55 = scmp.eq.s32.totalorder %s10, 0
      %p56 = por %p54, %p55
      %p57 = scmp.ne.s32.totalorder %s46, %s49
      %p58 = scmp.eq.s32.totalorder %s15, 3
      %p59 = por %p57, %p58
      %p60 = scmp.ne.s32.totalorder %s49, %s50
      %p61 = scmp.eq.s32.totalorder %s15, 0
      %p62 = por %p60, %p61
      %p63 = scmp.ne.s32.totalorder %s49, %s50
      %p64 = scmp.eq.s32.totalorder %s16, 3
      %p65 = por %p63, %p64
      %p67 = scmp.ne.s32.totalorder %s50, %s66
      %p68 = scmp.eq.s32.totalorder %s16, 0
      %p69 = por %p67, %p68
      %p70 = scmp.le.s32.totalorder 1, %s10
      %p71 = scmp.lt.s32.totalorder %s10, 5
      %p72 = pnand %p70, %p71
      %p73 = pneg %p72
      // Predicated region
      $region9: #{tpu_custom_call.1} parent=5 // pred_check
        _
      $region10: #{tpu_custom_call.1} parent=5 // pred_check_branch
        %75 = sbr.rel (%p72) target = $region12
      $region11: #{tpu_custom_call.1} parent=5 // pred_region
        %s76 = ssub.s32 %s10, 1
      $region12: #{tpu_custom_call.1} parent=5 // pred_fallthru
        _
      %p77 = scmp.lt.s32.totalorder %s10, 4
      // Predicated region
      $region13: #{tpu_custom_call.1} parent=5 // pred_check
        %p78 = pneg %p77
      $region14: #{tpu_custom_call.1} parent=5 // pred_check_branch
        %80 = sbr.rel (%p78) target = $region16
      $region15: #{tpu_custom_call.1} parent=5 // pred_region
        // Predicated region
        $region17: #{tpu_custom_call.1} parent=15 // pred_check
          %p81 = pneg %p30
        $region18: #{tpu_custom_call.1} parent=15 // pred_check_branch
          %83 = sbr.rel (%p81) target = $region20
        $region19: #{tpu_custom_call.1} parent=15 // pred_region
          %s84 = sand.u32 %s20, 1
          %s85 = scalar_lea.sflag [#allocation3], %s84
          %s86 = sand.u32 %s20, 1
          %s87 = smul.addr %s86, 32
          %s88 = scalar_lea.vmem [#allocation2], %s87
          %s89 = smul.u32 2, %s10
          %s91 = ssub.s32 512, 512
          %92 = vsyncadd %s85, %s91
          %s93 = smul.addr %s89, 2
          %s94 = smul.addr %s93, 128
          %s95 = scalar_lea.hbm %s0, %s94
          %s96 = sshll.u32 %s88, 4
          %s97 = int_to_ptr.vmem [resolvable:$true] %s96
          %102 = dma.hbm_to_vmem [thread:$0]  %s95, 512, %s97, %s85, 128, 128, 8
        $region20: #{tpu_custom_call.1} parent=15 // pred_fallthru
          _
      $region16: #{tpu_custom_call.1} parent=5 // pred_fallthru
        _
      %p103 = scmp.le.s32.totalorder 1, %s10
      %p104 = scmp.lt.s32.totalorder %s10, 5
      %p105 = pnand %p103, %p104
      %p106 = pneg %p105
      // Predicated region
      $region21: #{tpu_custom_call.1} parent=5 // pred_check
        _
      $region22: #{tpu_custom_call.1} parent=5 // pred_check_branch
        %108 = sbr.rel (%p105) target = $region24
      $region23: #{tpu_custom_call.1} parent=5 // pred_region
        %s109 = ssub.s32 %s10, 1
        %s110 = sand.u32 %s23, 1
        %s111 = scalar_lea.sflag [#allocation3], %s110
        %s112 = sand.u32 %s23, 1
        %s113 = smul.addr %s112, 32
        %s114 = scalar_lea.vmem [#allocation2], %s113
        // Predicated region
        $region25: #{tpu_custom_call.1} parent=23 // pred_check
          %p115 = pneg %p36
        $region26: #{tpu_custom_call.1} parent=23 // pred_check_branch
          %117 = sbr.rel (%p115) target = $region28
        $region27: #{tpu_custom_call.1} parent=23 // pred_region
          %118 = dma.done %s111, 512
        $region28: #{tpu_custom_call.1} parent=23 // pred_fallthru
          _
        %s119 = sand.u32 %s23, 1
        %s120 = scalar_lea.sflag [#allocation3], %s119
        %s121 = sand.u32 %s23, 1
        %s122 = smul.addr %s121, 32
        %s123 = scalar_lea.vmem [#allocation2], %s122
        %p124 = pneg %p36
        %p125 = pneg %p33
        %p126 = pneg %p62
        %p127 = pneg %p59
        %s128 = smul.u32 2, %s15
        %p129 = scmp.lt.s32.totalorder %s128, 7
        %s130 = scalar_select %p129, %s128, 7
        %s131 = smul.addr %s130, 2
        %s132 = smul.addr %s131, 8
        %s133 = scalar_lea.vmem %s1, %s132
        %s134 = smul.u32 2, %s15
        %s135 = smul.u32 2, %s15
        %p136 = scmp.lt.s32.totalorder %s135, 7
        %s137 = scalar_select %p136, %s135, 7
        %s138 = smul.addr %s137, 2
        %s139 = smul.addr %s138, 8
        %s140 = scalar_lea.vmem %s1, %s139
        %s141 = smul.u32 2, %s15
        %v142 = vld [vmem:[%s114] sm:$0xff]
        %v143 = vld [vmem:[%s114 + $0x8] sm:$0xff]
        %v144 = vld [vmem:[%s114 + $0x10] sm:$0xff]
        %v145 = vld [vmem:[%s114 + $0x18] sm:$0xff]
        %150 = vrot.lane.b32.xlu0 %v142, 126
        %v151 = vpop.permute.xlu0 %150
        %152 = vrot.lane.b32.xlu0 %v143, 126
        %v153 = vpop.permute.xlu0 %152
        %154 = vrot.lane.b32.xlu0 %v144, 126
        %v155 = vpop.permute.xlu0 %154
        %156 = vrot.lane.b32.xlu0 %v145, 126
        %v157 = vpop.permute.xlu0 %156
        %v162 = vadd.f32 %v142, %v151
        %v163 = vadd.f32 %v143, %v153
        %v164 = vadd.f32 %v144, %v155
        %v165 = vadd.f32 %v145, %v157
        %v166 = vmul.f32 %v162, 0.30450433
        %v167 = vmul.f32 %v163, 0.30450433
        %v168 = vmul.f32 %v164, 0.30450433
        %v169 = vmul.f32 %v165, 0.30450433
        %v170 = vmul.f32 %v142, 0.3909913
        %v171 = vmul.f32 %v143, 0.3909913
        %v172 = vmul.f32 %v144, 0.3909913
        %v173 = vmul.f32 %v145, 0.3909913
        %178 = vrot.lane.b32.xlu0 %v170, 127
        %v179 = vpop.permute.xlu0 %178
        %180 = vrot.lane.b32.xlu0 %v171, 127
        %v181 = vpop.permute.xlu0 %180
        %182 = vrot.lane.b32.xlu0 %v172, 127
        %v183 = vpop.permute.xlu0 %182
        %184 = vrot.lane.b32.xlu0 %v173, 127
        %v185 = vpop.permute.xlu0 %184
        %v190 = vadd.f32 %v166, %v179
        %v191 = vadd.f32 %v167, %v181
        %v192 = vadd.f32 %v168, %v183
        %v193 = vadd.f32 %v169, %v185
        %vm198 = vcmask 1045504
        %v199 = vrot.slane %v190, 2
        %v200 = vrot.slane %v191, 2
        %v201 = vsel %vm198, %v199, %v200
        %v202 = vrot.slane %v192, 2
        %v203 = vrot.slane %v193, 2
        %v204 = vsel %vm198, %v202, %v203
        %v209 = vadd.f32 %v190, %v201
        %v210 = vadd.f32 %v191, %v200
        %v211 = vadd.f32 %v192, %v204
        %v212 = vadd.f32 %v193, %v203
        %v213 = vmul.f32 %v209, 0.30450433
        %v214 = vmul.f32 %v210, 0.30450433
        %v215 = vmul.f32 %v211, 0.30450433
        %v216 = vmul.f32 %v212, 0.30450433
        %v217 = vmul.f32 %v190, 0.3909913
        %v218 = vmul.f32 %v191, 0.3909913
        %v219 = vmul.f32 %v192, 0.3909913
        %v220 = vmul.f32 %v193, 0.3909913
        %vm225 = vcmask 1046528
        %v226 = vrot.slane %v217, 1
        %v227 = vrot.slane %v218, 1
        %v228 = vsel %vm225, %v226, %v227
        %v229 = vrot.slane %v219, 1
        %v230 = vrot.slane %v220, 1
        %v231 = vsel %vm225, %v229, %v230
        %v236 = vadd.f32 %v213, %v228
        %v237 = vadd.f32 %v214, %v227
        %v238 = vadd.f32 %v215, %v231
        %v239 = vadd.f32 %v216, %v230
        %vm240 = vcmask 113664
        %241 = vst.msk [vmem:[%s140] sm:$0xff] %vm240, %v236
        %vm242 = vcmask 111616
        %243 = vst.msk [vmem:[%s140 + $0x8] sm:$0x3f] %vm242, %v237
        %244 = vst.msk [vmem:[%s140 + $0x10] sm:$0xff] %vm240, %v238
        %245 = vst.msk [vmem:[%s140 + $0x18] sm:$0x3f] %vm242, %v239
        %s246 = smul.u32 2, %s15
        %p247 = scmp.lt.s32.totalorder %s246, 7
        %s248 = scalar_select %p247, %s246, 7
        %s249 = smul.addr %s248, 2
        %s250 = smul.addr %s249, 8
        %s251 = scalar_lea.vmem %s1, %s250
        // Predicated region
        $region29: #{tpu_custom_call.1} parent=23 // pred_check
          %p252 = pneg %p59
        $region30: #{tpu_custom_call.1} parent=23 // pred_check_branch
          %254 = sbr.rel (%p252) target = $region32
        $region31: #{tpu_custom_call.1} parent=23 // pred_region
          %s255 = smul.u32 2, %s15
        $region32: #{tpu_custom_call.1} parent=23 // pred_fallthru
          _
      $region24: #{tpu_custom_call.1} parent=5 // pred_fallthru
        _
      %p256 = scmp.le.s32.totalorder 2, %s10
      // Predicated region
      $region33: #{tpu_custom_call.1} parent=5 // pred_check
        %p257 = pneg %p256
      $region34: #{tpu_custom_call.1} parent=5 // pred_check_branch
        %259 = sbr.rel (%p257) target = $region36
      $region35: #{tpu_custom_call.1} parent=5 // pred_region
        %s260 = ssub.s32 %s10, 2
        // Predicated region
        $region37: #{tpu_custom_call.1} parent=35 // pred_check
          %p261 = pneg %p65
        $region38: #{tpu_custom_call.1} parent=35 // pred_check_branch
          %263 = sbr.rel (%p261) target = $region40
        $region39: #{tpu_custom_call.1} parent=35 // pred_region
          %s264 = smul.u32 2, %s16
          %p265 = scmp.lt.s32.totalorder %s264, 7
          %s266 = scalar_select %p265, %s264, 7
          %s267 = smul.addr %s266, 2
          %s268 = smul.addr %s267, 8
          %s269 = scalar_lea.vmem %s1, %s268
        $region40: #{tpu_custom_call.1} parent=35 // pred_fallthru
          _
      $region36: #{tpu_custom_call.1} parent=5 // pred_fallthru
        _
    $region6: #{tpu_custom_call.1} parent=1 // loop_footer
      %s14 = sadd.s32 1, %s10
    $region7: #{tpu_custom_call.1} parent=1 // loop_footer_branch
      %9 = sbr.rel target = $region3
    $region8: #{tpu_custom_call.1} parent=1 // loop_exit
      _
    %270 = vsyncpa [#allocation3], 1
    %s271 = scalar_lea.sflag [#allocation3], 1
    %272 = vsyncpa %s271, 1

</llo_original>
